<compile_context>
chip_gen: v7x
topology: tpu7x:2x2x1
jax: 0.10.0
libtpu: 0.0.40
codegen_flags: <defaults>
</compile_context>

<pallas_src>
import jax
import jax.numpy as jnp
from jax.experimental import pallas as pl
from jax.experimental.pallas import tpu as pltpu

_TARGET_TILE_BYTES = 4 * 1024 * 1024   # ~4 MiB per block (per array)


# ---------------------------------------------------------------------------
# Backward kernel: grad_input = (-lambda_) * grad_output
# ---------------------------------------------------------------------------
def _grl_bwd_kernel(neg_lam_ref, g_ref, o_ref):
    # f32 scalar from SMEM, cast once to the gradient dtype (native-dtype VPU
    # multiply for bf16/f16; identical to the old f32 path for f32 grads).
    scale = neg_lam_ref[0].astype(o_ref.dtype)
    o_ref[...] = g_ref[...] * scale


def _neg_scale_pallas(g, lambda_):
    """Compute -lambda_ * g, streaming through a tiled, lane-dense Pallas kernel."""
    orig_shape = g.shape
    dtype = g.dtype
    total = g.size
    itemsize = jnp.dtype(dtype).itemsize
    neg_lam_f32 = -jnp.asarray(lambda_, dtype=jnp.float32)

    # Pick the widest lane-dense last dim that divides the element count.
    lanes = None
    for cand in (512, 256, 128):
        if total % cand == 0:
            lanes = cand
            break

    if lanes is None or total == 0:
        # Not divisible by 128 (or empty): a fused XLA multiply already hits
        # HBM roofline for this trivially mem-bound op; avoid any pad/copy.
        return (g.astype(jnp.float32) * neg_lam_f32).astype(dtype)

    rows = total // lanes
    # Reshape is a layout-preserving view of a dense array — no HBM copy.
    g2d = g.reshape(rows, lanes)

    # ~4 MiB tile in *bytes* regardless of dtype (bf16 gets 2x the rows).
    max_block_rows = max(8, _TARGET_TILE_BYTES // (lanes * itemsize))
    if rows <= max_block_rows:
        block_rows = rows            # full extent: always a legal block shape
    else:
        block_rows = (max_block_rows // 8) * 8   # multiple of 8 sublanes
    grid = (pl.cdiv(rows, block_rows),)          # partial last block is masked

    neg_lam = neg_lam_f32.reshape((1,))

    out2d = pl.pallas_call(
        _grl_bwd_kernel,
        out_shape=jax.ShapeDtypeStruct((rows, lanes), dtype),
        grid=grid,
        in_specs=[
            pl.BlockSpec(memory_space=pltpu.MemorySpace.SMEM),      # -lambda_
            pl.BlockSpec((block_rows, lanes), lambda i: (i, 0)),    # grad_out
        ],
        out_specs=pl.BlockSpec((block_rows, lanes), lambda i: (i, 0)),
        compiler_params=pltpu.CompilerParams(
            # TODO(synk): on v7x, switch to pltpu.CORE_PARALLEL (or a core_map
            # split) to drive both TensorCores' DMA engines.
            dimension_semantics=("parallel",),
            # 2 arrays x 2 buffers x ~4 MiB tile = ~16 MiB resident; set the
            # limit explicitly (v5e default scoped VMEM is only 16 MiB).
            vmem_limit_bytes=32 * 1024 * 1024,
        ),
        cost_estimate=pl.CostEstimate(
            flops=total,
            bytes_accessed=2 * total * itemsize,
            transcendentals=0,
        ),
        input_output_aliases={1: 0},   # reuse the cotangent buffer for output
    )(neg_lam, g2d)

    return out2d.reshape(orig_shape)


# ---------------------------------------------------------------------------
# GRLLayer: forward = identity (no kernel, no HBM traffic),
#           backward = gradient reversal (-lambda_ * g) via Pallas.
# ---------------------------------------------------------------------------
@jax.custom_vjp
def grl_layer(x, lambda_):
    return x


def _grl_fwd(x, lambda_):
    return x, lambda_


def _grl_bwd(lambda_, g):
    grad_x = _neg_scale_pallas(g, lambda_)
    # PyTorch returns None for lambda_'s grad -> zero cotangent matching primal.
    grad_lambda = jnp.zeros_like(jnp.asarray(lambda_))
    return (grad_x, grad_lambda)


grl_layer.defvjp(_grl_fwd, _grl_bwd)


# ---------------------------------------------------------------------------
# Demo / smoke test
# ---------------------------------------------------------------------------
if __name__ == "__main__":
    key = jax.random.PRNGKey(0)
    # NCHW input, matching PyTorch conv-style layout.
    x = jax.random.normal(key, (2, 4, 16, 16), dtype=jnp.float32)
    lambda_ = jnp.float32(0.5)

    # Forward (identity).
    y = grl_layer(x, lambda_)
    y = jax.block_until_ready(y)
    assert y.shape == x.shape and y.dtype == x.dtype
    assert bool(jnp.allclose(y, x)), "forward must be identity"

    # Backward (gradient reversal): d/dx sum(y) should be -lambda_ * ones.
    grad_x = jax.grad(lambda xx: jnp.sum(grl_layer(xx, lambda_)))(x)
    grad_x = jax.block_until_ready(grad_x)
    assert bool(jnp.allclose(grad_x, -lambda_ * jnp.ones_like(x))), \
        "backward must reverse and scale the gradient"

    print("KERNEL_OK")
</pallas_src>

<mosaic_0001>
module attributes {stable_mosaic.version = 11 : i64} {
  func.func @_grl_bwd_kernel(%arg0: i32, %arg1: memref<1xf32, #tpu.memory_space<smem>>, %arg2: memref<4x512xf32, #tpu.memory_space<vmem>>, %arg3: memref<4x512xf32, #tpu.memory_space<vmem>>) attributes {dimension_semantics = [#tpu.dimension_semantics<parallel>], iteration_bounds = array<i64: 1>, scalar_prefetch = 0 : i64, scratch_operands = 0 : i64, tpu.core_type = #tpu.core_type<tc>, window_params = [{transform_indices = @transform_0, window_bounds = array<i64: 1>}, {transform_indices = @transform_1, window_bounds = array<i64: 4, 512>}, {transform_indices = @transform_2, window_bounds = array<i64: 4, 512>}]} {
    %c0 = arith.constant 0 : index
    %0 = memref.load %arg1[%c0] : memref<1xf32, #tpu.memory_space<smem>>
    %c0_0 = arith.constant 0 : index
    %c0_1 = arith.constant 0 : index
    %1 = vector.load %arg2[%c0_0, %c0_1] : memref<4x512xf32, #tpu.memory_space<vmem>>, vector<4x512xf32>
    %2 = vector.broadcast %0 : f32 to vector<4x512xf32>
    %3 = arith.mulf %1, %2 : vector<4x512xf32>
    %c0_2 = arith.constant 0 : index
    %c0_3 = arith.constant 0 : index
    %4 = vector.load %arg3[%c0_2, %c0_3] : memref<4x512xf32, #tpu.memory_space<vmem>>, vector<4x512xf32>
    tpu.vector_store %arg3[%c0_2, %c0_3], %3 {strides = array<i32>} : memref<4x512xf32, #tpu.memory_space<vmem>>, vector<4x512xf32>,
    return
  }
  func.func @transform_0(%arg0: i32) -> i32 {
    %c0_i32 = arith.constant 0 : i32
    %c0_i32_0 = arith.constant 0 : i32
    return %c0_i32 : i32
  }
  func.func @transform_1(%arg0: i32) -> (i32, i32) {
    %c0_i32 = arith.constant 0 : i32
    %c0_i32_0 = arith.constant 0 : i32
    return %arg0, %c0_i32 : i32, i32
  }
  func.func @transform_2(%arg0: i32) -> (i32, i32) {
    %c0_i32 = arith.constant 0 : i32
    %c0_i32_0 = arith.constant 0 : i32
    return %arg0, %c0_i32 : i32, i32
  }
}

</mosaic_0001>

<llo_original>
// kernel: tpu_custom_call.1
$region0: #{tpu_custom_call.1}
  #allocation0 [shape = 'u32[]', space=smem, size = 0x4, offset = 0x4, fixed_abs, tag = 'smem constant byte address 0x4 - core index']
  #allocation1 [shape = 'u32[144,128]{1,0:T(1,128)}', space=vmem, size = 0x12000, scoped, tag = 'internal scratch']
  #allocation2 [shape = 'f32[1]{0:T(128)S(6)}', space=smem, size = 0x200, scoped, tag = 'scoped memory for tpu_custom_call.1']
  %s0 = inlined_call_operand.<no memory space> [shape: f32[1], index: 0, kind: input, shape index: {}]
  %s1 = inlined_call_operand.hbm [shape: f32[4,512], index: 1, kind: input, shape index: {}, may-alias: {1,2}]
  %s2 = inlined_call_operand.hbm [shape: f32[4,512], index: 2, kind: output, shape index: {}, may-alias: {1,2}]
  %s3 = sld [smem:[#allocation0]]
  $region22: #{tpu_custom_call.1} parent=0
    _
  %s5 = ssub.s32 1, %s3
  %s6 = scalar_select 0, %s5, %s3
  %7 = sst [smem:[#allocation2]] %s0
  $region1: #{tpu_custom_call.1} parent=0
    #allocation3 [shape = 'u8[8192]{0}', space=vmem, size = 0x2000, scoped, tag = 'input window, operand 1, single buffered']
    #allocation4 [shape = 's32[1]{0}', space=sflag, size = 0x4, scoped, tag = 'scoped memory for tpu_custom_call.1']
    #allocation5 [shape = 's32[1]{0}', space=sflag, size = 0x4, scoped, tag = 'scoped memory for tpu_custom_call.1']
    #allocation6 [shape = 'u8[8192]{0}', space=vmem, size = 0x2000, scoped, tag = 'output window, operand 0, single buffered']
    %8 = vsyncpa [#allocation4], 0
    %9 = vsyncpa [#allocation5], 0
    // Predicated region
    $region2: #{tpu_custom_call.1} parent=1 // pred_check
      _
    $region3: #{tpu_custom_call.1} parent=1 // pred_check_branch
      %11 = sbr.rel (0) target = $region5
    $region4: #{tpu_custom_call.1} parent=1 // pred_region
      _
    $region5: #{tpu_custom_call.1} parent=1 // pred_fallthru
      _
    // Predicated region
    $region6: #{tpu_custom_call.1} parent=1 // pred_check
      _
    $region7: #{tpu_custom_call.1} parent=1 // pred_check_branch
      %13 = sbr.rel (0) target = $region9
    $region8: #{tpu_custom_call.1} parent=1 // pred_region
      %s15 = ssub.s32 256, 256
      %16 = vsyncadd [#allocation4], %s15
      %s18 = sshll.u32 [#allocation3], 4
      %s19 = int_to_ptr.vmem [resolvable:$true] %s18
      %21 = dma.hbm_to_vmem [thread:$0]  %s1, 256, %s19, [#allocation4]
    $region9: #{tpu_custom_call.1} parent=1 // pred_fallthru
      _
    // Predicated region
    $region10: #{tpu_custom_call.1} parent=1 // pred_check
      _
    $region11: #{tpu_custom_call.1} parent=1 // pred_check_branch
      %23 = sbr.rel (0) target = $region13
    $region12: #{tpu_custom_call.1} parent=1 // pred_region
      %24 = dma.done [#allocation4], 256
    $region13: #{tpu_custom_call.1} parent=1 // pred_fallthru
      _
    %s25 = sld [smem:[#allocation2]]
    %v26 = vld [vmem:[#allocation3] sm:$0xff]
    %v27 = vld [vmem:[#allocation3 + $0x8] sm:$0xff]
    %v28 = vstv %s25
    %v29 = vmul.f32 %v26, %v28
    %v30 = vmul.f32 %v27, %v28
    %31 = vst [vmem:[#allocation6] sm:$0xff] %v29
    %32 = vst [vmem:[#allocation6 + $0x8] sm:$0xff] %v30
    // Predicated region
    $region14: #{tpu_custom_call.1} parent=1 // pred_check
      _
    $region15: #{tpu_custom_call.1} parent=1 // pred_check_branch
      %34 = sbr.rel (0) target = $region17
    $region16: #{tpu_custom_call.1} parent=1 // pred_region
      %s36 = ssub.s32 256, 256
      %37 = vsyncadd [#allocation5], %s36
      %s39 = sshll.u32 [#allocation6], 4
      %s40 = int_to_ptr.vmem [resolvable:$true] %s39
      %42 = dma.vmem_to_hbm [thread:$0]  %s40, 256, %s2, [#allocation5]
    $region17: #{tpu_custom_call.1} parent=1 // pred_fallthru
      _
    // Predicated region
    $region18: #{tpu_custom_call.1} parent=1 // pred_check
      _
    $region19: #{tpu_custom_call.1} parent=1 // pred_check_branch
      %44 = sbr.rel (0) target = $region21
    $region20: #{tpu_custom_call.1} parent=1 // pred_region
      %45 = dma.done [#allocation5], 256
    $region21: #{tpu_custom_call.1} parent=1 // pred_fallthru
      _
    %46 = vsyncpa [#allocation4], 1
    %47 = vsyncpa [#allocation5], 1

</llo_original>
